<compile_context>
chip_gen: v5e
topology: v5e:2x2
jax: 0.10.0
libtpu: 0.0.40
codegen_flags: <defaults>
</compile_context>

<pallas_src>
import numpy as np
import jax
import jax.numpy as jnp
from jax.experimental import pallas as pl
from jax.experimental.pallas import tpu as pltpu

# --- synthetic hyper-parameters (env-dependent in the original script) -------
STATE_DIM = 5      # env.state_dim for deep_mobile_printing_2d1r (synthetic)
OUT_SIZE = 5       # action count (synthetic)
HIDDEN = 32        # LSTM hidden size
BATCH = 2
TIME_STEP = 8
BP = 8             # batch padded to 8 sublanes (one full sublane group)

# Row offsets inside the single packed weight slab (all 8-aligned).
_OFF_W1 = 0                        # (128, 128)  rows 0:5, cols 0:64 real
_OFF_W2 = _OFF_W1 + 128            # (128, 128)  rows 0:64 real
_OFF_W3 = _OFF_W2 + 128            # (128, 128)
_OFF_WIH = _OFF_W3 + 128           # (128, 128)  (4H == 128), g-cols x2
_OFF_WHH = _OFF_WIH + 128          # (32, 128)   g-cols x2
_OFF_WHEAD = _OFF_WHH + HIDDEN     # (32, 128)   cols 0:5 adv, col 5 val
_OFF_BIAS = _OFF_WHEAD + HIDDEN    # (8, 128)    rows: b1,b2,b3,b_lstm,b_head
_W_ROWS = _OFF_BIAS + 8            # 584


# -----------------------------------------------------------------------------
# Pallas kernel: full Q_NET forward (one invocation, no grid).
# -----------------------------------------------------------------------------
def qnet_kernel(dyn_ref, w_ref, out_ref):
    # dyn_ref : (T*8 + 8, 128)  rows 0:T*8 = x (time-major, row = t*8 + b,
    #                           lanes 0:STATE_DIM real); last 8 rows = h0|c0
    #                           in lanes 0:H and H:2H.
    # w_ref   : (584, 128)      packed weight/bias slab (see offsets above).
    # out_ref : (8, 128)        lanes 0:OUT_SIZE = q, H:2H = h_n, 2H:3H = c_n.
    H = HIDDEN
    T8 = dyn_ref.shape[0] - BP
    T = T8 // BP

    # ---- packed weight / bias views (static, sublane-aligned slices) ----
    w1 = w_ref[_OFF_W1:_OFF_W1 + 128, :]
    w2 = w_ref[_OFF_W2:_OFF_W2 + 128, :]
    w3 = w_ref[_OFF_W3:_OFF_W3 + 128, :]
    w_ih = w_ref[_OFF_WIH:_OFF_WIH + 128, :]
    w_hh = w_ref[_OFF_WHH:_OFF_WHH + H, :]
    w_head = w_ref[_OFF_WHEAD:_OFF_WHEAD + H, :]

    b1 = w_ref[_OFF_BIAS + 0:_OFF_BIAS + 1, :]
    b2 = w_ref[_OFF_BIAS + 1:_OFF_BIAS + 2, :]
    b3 = w_ref[_OFF_BIAS + 2:_OFF_BIAS + 3, :]
    bl = w_ref[_OFF_BIAS + 3:_OFF_BIAS + 4, :]
    bh = w_ref[_OFF_BIAS + 4:_OFF_BIAS + 5, :]

    # ---- 3-layer MLP with ReLU on all T*8 rows at once (full 128-lane vregs;
    #      zero-padded weight rows make the padding lanes exact zeros) ----
    x = dyn_ref[0:T8, :]
    h1 = jnp.maximum(jnp.dot(x, w1, preferred_element_type=jnp.float32) + b1, 0.0)
    h2 = jnp.maximum(jnp.dot(h1, w2, preferred_element_type=jnp.float32) + b2, 0.0)
    h3 = jnp.maximum(jnp.dot(h2, w3, preferred_element_type=jnp.float32) + b3, 0.0)

    # ---- hoisted LSTM input projection (off the serial path) ----
    ih = jnp.dot(h3, w_ih, preferred_element_type=jnp.float32) + bl       # (T*8, 4H)

    h = dyn_ref[T8:T8 + BP, 0:H]          # (8, H)
    c = dyn_ref[T8:T8 + BP, H:2 * H]      # (8, H)

    # ---- LSTM recurrence, fully unrolled; gate order i, f, g, o ----
    # TODO(synk): could keep W_hh resident in MXU weight regs via
    # pltpu.matmul_push_rhs/matmul_acc_lhs/matmul_pop; left to the compiler.
    for t in range(T):
        gates = ih[t * BP:(t + 1) * BP, :] + jnp.dot(
            h, w_hh, preferred_element_type=jnp.float32)                  # (8, 4H)
        sg = jax.nn.sigmoid(gates)        # single full-vreg EUP op per step
        i_g = sg[:, 0:H]
        f_g = sg[:, H:2 * H]
        # g columns were pre-scaled by 2: tanh(z) = 2*sigmoid(2z) - 1
        g_g = 2.0 * sg[:, 2 * H:3 * H] - 1.0
        o_g = sg[:, 3 * H:4 * H]
        c = f_g * c + i_g * g_g
        h = o_g * jnp.tanh(c)

    # ---- fused dueling head: one matmul for [adv | val] ----
    head = jnp.dot(h, w_head, preferred_element_type=jnp.float32) + bh    # (8, 128)
    adv = head[:, 0:OUT_SIZE]
    val = head[:, OUT_SIZE:OUT_SIZE + 1]
    q = val + (adv - jnp.mean(adv, axis=1, keepdims=True))

    # ---- single lane-dense output slab ----
    out_ref[...] = jnp.zeros_like(out_ref)
    out_ref[:, 0:OUT_SIZE] = q
    out_ref[:, H:2 * H] = h
    out_ref[:, 2 * H:3 * H] = c


# -----------------------------------------------------------------------------
# Parameter packing (done once, outside the hot path)
# -----------------------------------------------------------------------------
def pack_params(p):
    H = HIDDEN
    O1 = OUT_SIZE + 1
    f32 = jnp.float32

    # bake a factor of 2 into the g-gate columns so the kernel only needs one
    # sigmoid per step (tanh recovered as 2*sigmoid(2z)-1).
    gscale = jnp.ones((4 * H,), f32).at[2 * H:3 * H].set(2.0)

    w1 = jnp.zeros((128, 128), f32).at[0:STATE_DIM, 0:64].set(p["w1"])
    w2 = jnp.zeros((128, 128), f32).at[0:64, :].set(p["w2"])
    w3 = p["w3"]
    w_ih = p["w_ih"] * gscale
    w_hh = p["w_hh"] * gscale
    w_head = (jnp.zeros((H, 128), f32)
              .at[:, 0:OUT_SIZE].set(p["w_adv"])
              .at[:, OUT_SIZE:O1].set(p["w_val"]))

    bias = jnp.zeros((8, 128), f32)
    bias = bias.at[0, 0:64].set(p["b1"][0])
    bias = bias.at[1, :].set(p["b2"][0])
    bias = bias.at[2, :].set(p["b3"][0])
    bias = bias.at[3, :].set(p["b_lstm"][0] * gscale)
    bias = bias.at[4, 0:OUT_SIZE].set(p["b_adv"][0])
    bias = bias.at[4, OUT_SIZE:O1].set(p["b_val"][0])

    w_all = jnp.concatenate([w1, w2, w3, w_ih, w_hh, w_head, bias], axis=0)
    assert w_all.shape == (_W_ROWS, 128)
    return {"w_all": w_all}


# -----------------------------------------------------------------------------
# Wrapper
# -----------------------------------------------------------------------------
def qnet_forward(x, hidden_state, cell_state, packed):
    """x: (B, T, STATE_DIM); hidden/cell: (1, B, HIDDEN) like PyTorch nn.LSTM."""
    B, T, S = x.shape
    H = HIDDEN
    assert B <= BP and S <= 128

    # Time-major rows (row = t*8 + b), batch padded to 8 sublanes, lanes to 128.
    x_tm = jnp.transpose(x, (1, 0, 2))                                     # (T, B, S)
    x_tm = jnp.pad(x_tm, ((0, 0), (0, BP - B), (0, 128 - S)))              # (T, 8, 128)
    x_rows = x_tm.reshape(T * BP, 128)

    hc = jnp.zeros((BP, 128), jnp.float32)
    hc = hc.at[0:B, 0:H].set(hidden_state[0])
    hc = hc.at[0:B, H:2 * H].set(cell_state[0])

    dyn = jnp.concatenate([x_rows, hc], axis=0)                            # (T*8+8, 128)

    # Advisory cost estimate for the surrounding XLA graph.
    flops = (2 * T * BP * 128 * 128 * 4          # fc1/fc2/fc3 + ih projection
             + T * 2 * BP * H * 4 * H            # recurrence h @ W_hh
             + 2 * BP * H * 128)                 # dueling head
    transcendentals = T * (BP * 4 * H + BP * H)  # sigmoid(gates) + tanh(c)
    bytes_accessed = 4 * (dyn.size + packed["w_all"].size + BP * 128)

    out = pl.pallas_call(
        qnet_kernel,
        out_shape=jax.ShapeDtypeStruct((BP, 128), jnp.float32),
        in_specs=[pl.BlockSpec(memory_space=pltpu.MemorySpace.VMEM)] * 2,
        out_specs=pl.BlockSpec(memory_space=pltpu.MemorySpace.VMEM),
        cost_estimate=pl.CostEstimate(flops=flops,
                                      transcendentals=transcendentals,
                                      bytes_accessed=bytes_accessed),
    )(dyn, packed["w_all"])

    q = out[0:B, 0:OUT_SIZE]
    h_n = out[0:B, H:2 * H]
    c_n = out[0:B, 2 * H:3 * H]
    # Match PyTorch return convention: (qout, (h_n, c_n)) with (1, B, H) states.
    return q, (h_n[None, :, :], c_n[None, :, :])


# -----------------------------------------------------------------------------
# Deterministic parameter initialization (mirrors the PyTorch __init__)
# -----------------------------------------------------------------------------
def _xavier_uniform(key, fan_in, fan_out, gain):
    limit = gain * np.sqrt(6.0 / (fan_in + fan_out))
    # stored as (in, out) so the kernel does x @ W + b
    return jax.random.uniform(key, (fan_in, fan_out), jnp.float32, -limit, limit)


def init_params(key):
    gain_relu = float(np.sqrt(2.0))  # nn.init.calculate_gain('relu')
    ks = jax.random.split(key, 10)
    k_lstm = 1.0 / np.sqrt(HIDDEN)   # PyTorch default LSTM init

    params = {
        "w1": _xavier_uniform(ks[0], STATE_DIM, 64, gain_relu),
        "b1": jnp.zeros((1, 64), jnp.float32),
        "w2": _xavier_uniform(ks[1], 64, 128, gain_relu),
        "b2": jnp.zeros((1, 128), jnp.float32),
        "w3": _xavier_uniform(ks[2], 128, 128, gain_relu),
        "b3": jnp.zeros((1, 128), jnp.float32),
        # LSTM weights stored (in, 4H); gate order i, f, g, o
        "w_ih": jax.random.uniform(ks[3], (128, 4 * HIDDEN), jnp.float32, -k_lstm, k_lstm),
        "w_hh": jax.random.uniform(ks[4], (HIDDEN, 4 * HIDDEN), jnp.float32, -k_lstm, k_lstm),
        "b_lstm": (jax.random.uniform(ks[5], (1, 4 * HIDDEN), jnp.float32, -k_lstm, k_lstm)
                   + jax.random.uniform(ks[6], (1, 4 * HIDDEN), jnp.float32, -k_lstm, k_lstm)),
        "w_adv": _xavier_uniform(ks[7], HIDDEN, OUT_SIZE, gain_relu),
        "b_adv": jnp.zeros((1, OUT_SIZE), jnp.float32),
        "w_val": _xavier_uniform(ks[8], HIDDEN, 1, gain_relu),
        "b_val": jnp.zeros((1, 1), jnp.float32),
    }
    return params


# -----------------------------------------------------------------------------
# Pure-JAX reference (for correctness check)
# -----------------------------------------------------------------------------
def qnet_reference(x, hidden_state, cell_state, params):
    B, T, _ = x.shape
    xf = x.reshape(B * T, STATE_DIM)
    h1 = jnp.maximum(xf @ params["w1"] + params["b1"], 0.0)
    h2 = jnp.maximum(h1 @ params["w2"] + params["b2"], 0.0)
    h3 = jnp.maximum(h2 @ params["w3"] + params["b3"], 0.0)
    feats = h3.reshape(B, T, 128)

    h, c = hidden_state[0], cell_state[0]
    H = HIDDEN
    for t in range(T):
        gates = feats[:, t, :] @ params["w_ih"] + h @ params["w_hh"] + params["b_lstm"]
        i_g = jax.nn.sigmoid(gates[:, 0:H])
        f_g = jax.nn.sigmoid(gates[:, H:2 * H])
        g_g = jnp.tanh(gates[:, 2 * H:3 * H])
        o_g = jax.nn.sigmoid(gates[:, 3 * H:4 * H])
        c = f_g * c + i_g * g_g
        h = o_g * jnp.tanh(c)

    adv = h @ params["w_adv"] + params["b_adv"]
    val = h @ params["w_val"] + params["b_val"]
    q = val + (adv - jnp.mean(adv, axis=1, keepdims=True))
    return q, (h[None], c[None])


if __name__ == "__main__":
    key = jax.random.PRNGKey(0)
    k_param, k_x = jax.random.split(key)

    params = init_params(k_param)
    packed = pack_params(params)

    x = jax.random.normal(k_x, (BATCH, TIME_STEP, STATE_DIM), jnp.float32)
    # init_hidden_states equivalent
    h0 = jnp.zeros((1, BATCH, HIDDEN), jnp.float32)
    c0 = jnp.zeros((1, BATCH, HIDDEN), jnp.float32)

    q, (h_n, c_n) = qnet_forward(x, h0, c0, packed)
    q = jax.block_until_ready(q)
    h_n = jax.block_until_ready(h_n)
    c_n = jax.block_until_ready(c_n)

    q_ref, (h_ref, c_ref) = qnet_reference(x, h0, c0, params)
    assert np.allclose(np.asarray(q), np.asarray(q_ref), atol=1e-4, rtol=1e-4)
    assert np.allclose(np.asarray(h_n), np.asarray(h_ref), atol=1e-4, rtol=1e-4)
    assert np.allclose(np.asarray(c_n), np.asarray(c_ref), atol=1e-4, rtol=1e-4)

    print("KERNEL_OK")
</pallas_src>

<mosaic_0001>
module attributes {stable_mosaic.version = 11 : i64} {
  func.func @qnet_kernel(%arg0: memref<72x128xf32, #tpu.memory_space<vmem>>, %arg1: memref<584x128xf32, #tpu.memory_space<vmem>>, %arg2: memref<8x128xf32, #tpu.memory_space<vmem>>) attributes {dimension_semantics = [], scalar_prefetch = 0 : i64, scratch_operands = 0 : i64, tpu.core_type = #tpu.core_type<tc>} {
    %c0 = arith.constant 0 : index
    %c0_0 = arith.constant 0 : index
    %0 = vector.load %arg1[%c0, %c0_0] : memref<584x128xf32, #tpu.memory_space<vmem>>, vector<128x128xf32>
    %c128 = arith.constant 128 : index
    %c0_1 = arith.constant 0 : index
    %1 = vector.load %arg1[%c128, %c0_1] : memref<584x128xf32, #tpu.memory_space<vmem>>, vector<128x128xf32>
    %c256 = arith.constant 256 : index
    %c0_2 = arith.constant 0 : index
    %2 = vector.load %arg1[%c256, %c0_2] : memref<584x128xf32, #tpu.memory_space<vmem>>, vector<128x128xf32>
    %c384 = arith.constant 384 : index
    %c0_3 = arith.constant 0 : index
    %3 = vector.load %arg1[%c384, %c0_3] : memref<584x128xf32, #tpu.memory_space<vmem>>, vector<128x128xf32>
    %c512 = arith.constant 512 : index
    %c0_4 = arith.constant 0 : index
    %4 = vector.load %arg1[%c512, %c0_4] : memref<584x128xf32, #tpu.memory_space<vmem>>, vector<32x128xf32>
    %c544 = arith.constant 544 : index
    %c0_5 = arith.constant 0 : index
    %5 = vector.load %arg1[%c544, %c0_5] : memref<584x128xf32, #tpu.memory_space<vmem>>, vector<32x128xf32>
    %c576 = arith.constant 576 : index
    %c0_6 = arith.constant 0 : index
    %6 = vector.load %arg1[%c576, %c0_6] : memref<584x128xf32, #tpu.memory_space<vmem>>, vector<1x128xf32>
    %c577 = arith.constant 577 : index
    %c0_7 = arith.constant 0 : index
    %7 = vector.load %arg1[%c577, %c0_7] : memref<584x128xf32, #tpu.memory_space<vmem>>, vector<1x128xf32>
    %c578 = arith.constant 578 : index
    %c0_8 = arith.constant 0 : index
    %8 = vector.load %arg1[%c578, %c0_8] : memref<584x128xf32, #tpu.memory_space<vmem>>, vector<1x128xf32>
    %c579 = arith.constant 579 : index
    %c0_9 = arith.constant 0 : index
    %9 = vector.load %arg1[%c579, %c0_9] : memref<584x128xf32, #tpu.memory_space<vmem>>, vector<1x128xf32>
    %c580 = arith.constant 580 : index
    %c0_10 = arith.constant 0 : index
    %10 = vector.load %arg1[%c580, %c0_10] : memref<584x128xf32, #tpu.memory_space<vmem>>, vector<1x128xf32>
    %c0_11 = arith.constant 0 : index
    %c0_12 = arith.constant 0 : index
    %11 = vector.load %arg0[%c0_11, %c0_12] : memref<72x128xf32, #tpu.memory_space<vmem>>, vector<64x128xf32>
    %cst = arith.constant dense<0.000000e+00> : vector<64x128xf32>
    %12 = tpu.matmul %11, %0, %cst {dimension_numbers = #tpu.dot_dimension_numbers<[1], [0], [0], [1], [0, 0, 1, 1], [], []>} : vector<64x128xf32>, vector<128x128xf32>, vector<64x128xf32> -> vector<64x128xf32>
    %13 = vector.broadcast %6 : vector<1x128xf32> to vector<64x128xf32>
    %14 = arith.addf %12, %13 : vector<64x128xf32>
    %cst_13 = arith.constant 0.000000e+00 : f32
    %15 = vector.broadcast %cst_13 : f32 to vector<64x128xf32>
    %16 = arith.maximumf %14, %15 : vector<64x128xf32>
    %cst_14 = arith.constant dense<0.000000e+00> : vector<64x128xf32>
    %17 = tpu.matmul %16, %1, %cst_14 {dimension_numbers = #tpu.dot_dimension_numbers<[1], [0], [0], [1], [0, 0, 1, 1], [], []>} : vector<64x128xf32>, vector<128x128xf32>, vector<64x128xf32> -> vector<64x128xf32>
    %18 = vector.broadcast %7 : vector<1x128xf32> to vector<64x128xf32>
    %19 = arith.addf %17, %18 : vector<64x128xf32>
    %cst_15 = arith.constant 0.000000e+00 : f32
    %20 = vector.broadcast %cst_15 : f32 to vector<64x128xf32>
    %21 = arith.maximumf %19, %20 : vector<64x128xf32>
    %cst_16 = arith.constant dense<0.000000e+00> : vector<64x128xf32>
    %22 = tpu.matmul %21, %2, %cst_16 {dimension_numbers = #tpu.dot_dimension_numbers<[1], [0], [0], [1], [0, 0, 1, 1], [], []>} : vector<64x128xf32>, vector<128x128xf32>, vector<64x128xf32> -> vector<64x128xf32>
    %23 = vector.broadcast %8 : vector<1x128xf32> to vector<64x128xf32>
    %24 = arith.addf %22, %23 : vector<64x128xf32>
    %cst_17 = arith.constant 0.000000e+00 : f32
    %25 = vector.broadcast %cst_17 : f32 to vector<64x128xf32>
    %26 = arith.maximumf %24, %25 : vector<64x128xf32>
    %cst_18 = arith.constant dense<0.000000e+00> : vector<64x128xf32>
    %27 = tpu.matmul %26, %3, %cst_18 {dimension_numbers = #tpu.dot_dimension_numbers<[1], [0], [0], [1], [0, 0, 1, 1], [], []>} : vector<64x128xf32>, vector<128x128xf32>, vector<64x128xf32> -> vector<64x128xf32>
    %28 = vector.broadcast %9 : vector<1x128xf32> to vector<64x128xf32>
    %29 = arith.addf %27, %28 : vector<64x128xf32>
    %c64 = arith.constant 64 : index
    %c0_19 = arith.constant 0 : index
    %30 = vector.load %arg0[%c64, %c0_19] : memref<72x128xf32, #tpu.memory_space<vmem>>, vector<8x32xf32>
    %c64_20 = arith.constant 64 : index
    %c32 = arith.constant 32 : index
    %31 = vector.load %arg0[%c64_20, %c32] : memref<72x128xf32, #tpu.memory_space<vmem>>, vector<8x32xf32>
    %32 = vector.extract_strided_slice %29 {offsets = [0, 0], sizes = [8, 128], strides = [1, 1]} : vector<64x128xf32> to vector<8x128xf32>
    %cst_21 = arith.constant dense<0.000000e+00> : vector<8x128xf32>
    %33 = tpu.matmul %30, %4, %cst_21 {dimension_numbers = #tpu.dot_dimension_numbers<[1], [0], [0], [1], [0, 0, 1, 1], [], []>} : vector<8x32xf32>, vector<32x128xf32>, vector<8x128xf32> -> vector<8x128xf32>
    %34 = arith.addf %32, %33 : vector<8x128xf32>
    %35 = arith.negf %34 : vector<8x128xf32>
    %36 = math.exp %35 : vector<8x128xf32>
    %cst_22 = arith.constant 1.000000e+00 : f32
    %37 = vector.broadcast %cst_22 : f32 to vector<8x128xf32>
    %38 = arith.addf %37, %36 : vector<8x128xf32>
    %39 = arith.divf %37, %38 : vector<8x128xf32>
    %40 = vector.extract_strided_slice %39 {offsets = [0, 0], sizes = [8, 32], strides = [1, 1]} : vector<8x128xf32> to vector<8x32xf32>
    %41 = vector.extract_strided_slice %39 {offsets = [0, 32], sizes = [8, 32], strides = [1, 1]} : vector<8x128xf32> to vector<8x32xf32>
    %42 = vector.extract_strided_slice %39 {offsets = [0, 64], sizes = [8, 32], strides = [1, 1]} : vector<8x128xf32> to vector<8x32xf32>
    %cst_23 = arith.constant 2.000000e+00 : f32
    %43 = vector.broadcast %cst_23 : f32 to vector<8x32xf32>
    %44 = arith.mulf %43, %42 : vector<8x32xf32>
    %cst_24 = arith.constant 1.000000e+00 : f32
    %45 = vector.broadcast %cst_24 : f32 to vector<8x32xf32>
    %46 = arith.subf %44, %45 : vector<8x32xf32>
    %47 = vector.extract_strided_slice %39 {offsets = [0, 96], sizes = [8, 32], strides = [1, 1]} : vector<8x128xf32> to vector<8x32xf32>
    %48 = arith.mulf %41, %31 : vector<8x32xf32>
    %49 = arith.mulf %40, %46 : vector<8x32xf32>
    %50 = arith.addf %48, %49 : vector<8x32xf32>
    %51 = math.tanh %50 : vector<8x32xf32>
    %52 = arith.mulf %47, %51 : vector<8x32xf32>
    %53 = vector.extract_strided_slice %29 {offsets = [8, 0], sizes = [8, 128], strides = [1, 1]} : vector<64x128xf32> to vector<8x128xf32>
    %cst_25 = arith.constant dense<0.000000e+00> : vector<8x128xf32>
    %54 = tpu.matmul %52, %4, %cst_25 {dimension_numbers = #tpu.dot_dimension_numbers<[1], [0], [0], [1], [0, 0, 1, 1], [], []>} : vector<8x32xf32>, vector<32x128xf32>, vector<8x128xf32> -> vector<8x128xf32>
    %55 = arith.addf %53, %54 : vector<8x128xf32>
    %56 = arith.negf %55 : vector<8x128xf32>
    %57 = math.exp %56 : vector<8x128xf32>
    %cst_26 = arith.constant 1.000000e+00 : f32
    %58 = vector.broadcast %cst_26 : f32 to vector<8x128xf32>
    %59 = arith.addf %58, %57 : vector<8x128xf32>
    %60 = arith.divf %58, %59 : vector<8x128xf32>
    %61 = vector.extract_strided_slice %60 {offsets = [0, 0], sizes = [8, 32], strides = [1, 1]} : vector<8x128xf32> to vector<8x32xf32>
    %62 = vector.extract_strided_slice %60 {offsets = [0, 32], sizes = [8, 32], strides = [1, 1]} : vector<8x128xf32> to vector<8x32xf32>
    %63 = vector.extract_strided_slice %60 {offsets = [0, 64], sizes = [8, 32], strides = [1, 1]} : vector<8x128xf32> to vector<8x32xf32>
    %cst_27 = arith.constant 2.000000e+00 : f32
    %64 = vector.broadcast %cst_27 : f32 to vector<8x32xf32>
    %65 = arith.mulf %64, %63 : vector<8x32xf32>
    %cst_28 = arith.constant 1.000000e+00 : f32
    %66 = vector.broadcast %cst_28 : f32 to vector<8x32xf32>
    %67 = arith.subf %65, %66 : vector<8x32xf32>
    %68 = vector.extract_strided_slice %60 {offsets = [0, 96], sizes = [8, 32], strides = [1, 1]} : vector<8x128xf32> to vector<8x32xf32>
    %69 = arith.mulf %62, %50 : vector<8x32xf32>
    %70 = arith.mulf %61, %67 : vector<8x32xf32>
    %71 = arith.addf %69, %70 : vector<8x32xf32>
    %72 = math.tanh %71 : vector<8x32xf32>
    %73 = arith.mulf %68, %72 : vector<8x32xf32>
    %74 = vector.extract_strided_slice %29 {offsets = [16, 0], sizes = [8, 128], strides = [1, 1]} : vector<64x128xf32> to vector<8x128xf32>
    %cst_29 = arith.constant dense<0.000000e+00> : vector<8x128xf32>
    %75 = tpu.matmul %73, %4, %cst_29 {dimension_numbers = #tpu.dot_dimension_numbers<[1], [0], [0], [1], [0, 0, 1, 1], [], []>} : vector<8x32xf32>, vector<32x128xf32>, vector<8x128xf32> -> vector<8x128xf32>
    %76 = arith.addf %74, %75 : vector<8x128xf32>
    %77 = arith.negf %76 : vector<8x128xf32>
    %78 = math.exp %77 : vector<8x128xf32>
    %cst_30 = arith.constant 1.000000e+00 : f32
    %79 = vector.broadcast %cst_30 : f32 to vector<8x128xf32>
    %80 = arith.addf %79, %78 : vector<8x128xf32>
    %81 = arith.divf %79, %80 : vector<8x128xf32>
    %82 = vector.extract_strided_slice %81 {offsets = [0, 0], sizes = [8, 32], strides = [1, 1]} : vector<8x128xf32> to vector<8x32xf32>
    %83 = vector.extract_strided_slice %81 {offsets = [0, 32], sizes = [8, 32], strides = [1, 1]} : vector<8x128xf32> to vector<8x32xf32>
    %84 = vector.extract_strided_slice %81 {offsets = [0, 64], sizes = [8, 32], strides = [1, 1]} : vector<8x128xf32> to vector<8x32xf32>
    %cst_31 = arith.constant 2.000000e+00 : f32
    %85 = vector.broadcast %cst_31 : f32 to vector<8x32xf32>
    %86 = arith.mulf %85, %84 : vector<8x32xf32>
    %cst_32 = arith.constant 1.000000e+00 : f32
    %87 = vector.broadcast %cst_32 : f32 to vector<8x32xf32>
    %88 = arith.subf %86, %87 : vector<8x32xf32>
    %89 = vector.extract_strided_slice %81 {offsets = [0, 96], sizes = [8, 32], strides = [1, 1]} : vector<8x128xf32> to vector<8x32xf32>
    %90 = arith.mulf %83, %71 : vector<8x32xf32>
    %91 = arith.mulf %82, %88 : vector<8x32xf32>
    %92 = arith.addf %90, %91 : vector<8x32xf32>
    %93 = math.tanh %92 : vector<8x32xf32>
    %94 = arith.mulf %89, %93 : vector<8x32xf32>
    %95 = vector.extract_strided_slice %29 {offsets = [24, 0], sizes = [8, 128], strides = [1, 1]} : vector<64x128xf32> to vector<8x128xf32>
    %cst_33 = arith.constant dense<0.000000e+00> : vector<8x128xf32>
    %96 = tpu.matmul %94, %4, %cst_33 {dimension_numbers = #tpu.dot_dimension_numbers<[1], [0], [0], [1], [0, 0, 1, 1], [], []>} : vector<8x32xf32>, vector<32x128xf32>, vector<8x128xf32> -> vector<8x128xf32>
    %97 = arith.addf %95, %96 : vector<8x128xf32>
    %98 = arith.negf %97 : vector<8x128xf32>
    %99 = math.exp %98 : vector<8x128xf32>
    %cst_34 = arith.constant 1.000000e+00 : f32
    %100 = vector.broadcast %cst_34 : f32 to vector<8x128xf32>
    %101 = arith.addf %100, %99 : vector<8x128xf32>
    %102 = arith.divf %100, %101 : vector<8x128xf32>
    %103 = vector.extract_strided_slice %102 {offsets = [0, 0], sizes = [8, 32], strides = [1, 1]} : vector<8x128xf32> to vector<8x32xf32>
    %104 = vector.extract_strided_slice %102 {offsets = [0, 32], sizes = [8, 32], strides = [1, 1]} : vector<8x128xf32> to vector<8x32xf32>
    %105 = vector.extract_strided_slice %102 {offsets = [0, 64], sizes = [8, 32], strides = [1, 1]} : vector<8x128xf32> to vector<8x32xf32>
    %cst_35 = arith.constant 2.000000e+00 : f32
    %106 = vector.broadcast %cst_35 : f32 to vector<8x32xf32>
    %107 = arith.mulf %106, %105 : vector<8x32xf32>
    %cst_36 = arith.constant 1.000000e+00 : f32
    %108 = vector.broadcast %cst_36 : f32 to vector<8x32xf32>
    %109 = arith.subf %107, %108 : vector<8x32xf32>
    %110 = vector.extract_strided_slice %102 {offsets = [0, 96], sizes = [8, 32], strides = [1, 1]} : vector<8x128xf32> to vector<8x32xf32>
    %111 = arith.mulf %104, %92 : vector<8x32xf32>
    %112 = arith.mulf %103, %109 : vector<8x32xf32>
    %113 = arith.addf %111, %112 : vector<8x32xf32>
    %114 = math.tanh %113 : vector<8x32xf32>
    %115 = arith.mulf %110, %114 : vector<8x32xf32>
    %116 = vector.extract_strided_slice %29 {offsets = [32, 0], sizes = [8, 128], strides = [1, 1]} : vector<64x128xf32> to vector<8x128xf32>
    %cst_37 = arith.constant dense<0.000000e+00> : vector<8x128xf32>
    %117 = tpu.matmul %115, %4, %cst_37 {dimension_numbers = #tpu.dot_dimension_numbers<[1], [0], [0], [1], [0, 0, 1, 1], [], []>} : vector<8x32xf32>, vector<32x128xf32>, vector<8x128xf32> -> vector<8x128xf32>
    %118 = arith.addf %116, %117 : vector<8x128xf32>
    %119 = arith.negf %118 : vector<8x128xf32>
    %120 = math.exp %119 : vector<8x128xf32>
    %cst_38 = arith.constant 1.000000e+00 : f32
    %121 = vector.broadcast %cst_38 : f32 to vector<8x128xf32>
    %122 = arith.addf %121, %120 : vector<8x128xf32>
    %123 = arith.divf %121, %122 : vector<8x128xf32>
    %124 = vector.extract_strided_slice %123 {offsets = [0, 0], sizes = [8, 32], strides = [1, 1]} : vector<8x128xf32> to vector<8x32xf32>
    %125 = vector.extract_strided_slice %123 {offsets = [0, 32], sizes = [8, 32], strides = [1, 1]} : vector<8x128xf32> to vector<8x32xf32>
    %126 = vector.extract_strided_slice %123 {offsets = [0, 64], sizes = [8, 32], strides = [1, 1]} : vector<8x128xf32> to vector<8x32xf32>
    %cst_39 = arith.constant 2.000000e+00 : f32
    %127 = vector.broadcast %cst_39 : f32 to vector<8x32xf32>
    %128 = arith.mulf %127, %126 : vector<8x32xf32>
    %cst_40 = arith.constant 1.000000e+00 : f32
    %129 = vector.broadcast %cst_40 : f32 to vector<8x32xf32>
    %130 = arith.subf %128, %129 : vector<8x32xf32>
    %131 = vector.extract_strided_slice %123 {offsets = [0, 96], sizes = [8, 32], strides = [1, 1]} : vector<8x128xf32> to vector<8x32xf32>
    %132 = arith.mulf %125, %113 : vector<8x32xf32>
    %133 = arith.mulf %124, %130 : vector<8x32xf32>
    %134 = arith.addf %132, %133 : vector<8x32xf32>
    %135 = math.tanh %134 : vector<8x32xf32>
    %136 = arith.mulf %131, %135 : vector<8x32xf32>
    %137 = vector.extract_strided_slice %29 {offsets = [40, 0], sizes = [8, 128], strides = [1, 1]} : vector<64x128xf32> to vector<8x128xf32>
    %cst_41 = arith.constant dense<0.000000e+00> : vector<8x128xf32>
    %138 = tpu.matmul %136, %4, %cst_41 {dimension_numbers = #tpu.dot_dimension_numbers<[1], [0], [0], [1], [0, 0, 1, 1], [], []>} : vector<8x32xf32>, vector<32x128xf32>, vector<8x128xf32> -> vector<8x128xf32>
    %139 = arith.addf %137, %138 : vector<8x128xf32>
    %140 = arith.negf %139 : vector<8x128xf32>
    %141 = math.exp %140 : vector<8x128xf32>
    %cst_42 = arith.constant 1.000000e+00 : f32
    %142 = vector.broadcast %cst_42 : f32 to vector<8x128xf32>
    %143 = arith.addf %142, %141 : vector<8x128xf32>
    %144 = arith.divf %142, %143 : vector<8x128xf32>
    %145 = vector.extract_strided_slice %144 {offsets = [0, 0], sizes = [8, 32], strides = [1, 1]} : vector<8x128xf32> to vector<8x32xf32>
    %146 = vector.extract_strided_slice %144 {offsets = [0, 32], sizes = [8, 32], strides = [1, 1]} : vector<8x128xf32> to vector<8x32xf32>
    %147 = vector.extract_strided_slice %144 {offsets = [0, 64], sizes = [8, 32], strides = [1, 1]} : vector<8x128xf32> to vector<8x32xf32>
    %cst_43 = arith.constant 2.000000e+00 : f32
    %148 = vector.broadcast %cst_43 : f32 to vector<8x32xf32>
    %149 = arith.mulf %148, %147 : vector<8x32xf32>
    %cst_44 = arith.constant 1.000000e+00 : f32
    %150 = vector.broadcast %cst_44 : f32 to vector<8x32xf32>
    %151 = arith.subf %149, %150 : vector<8x32xf32>
    %152 = vector.extract_strided_slice %144 {offsets = [0, 96], sizes = [8, 32], strides = [1, 1]} : vector<8x128xf32> to vector<8x32xf32>
    %153 = arith.mulf %146, %134 : vector<8x32xf32>
    %154 = arith.mulf %145, %151 : vector<8x32xf32>
    %155 = arith.addf %153, %154 : vector<8x32xf32>
    %156 = math.tanh %155 : vector<8x32xf32>
    %157 = arith.mulf %152, %156 : vector<8x32xf32>
    %158 = vector.extract_strided_slice %29 {offsets = [48, 0], sizes = [8, 128], strides = [1, 1]} : vector<64x128xf32> to vector<8x128xf32>
    %cst_45 = arith.constant dense<0.000000e+00> : vector<8x128xf32>
    %159 = tpu.matmul %157, %4, %cst_45 {dimension_numbers = #tpu.dot_dimension_numbers<[1], [0], [0], [1], [0, 0, 1, 1], [], []>} : vector<8x32xf32>, vector<32x128xf32>, vector<8x128xf32> -> vector<8x128xf32>
    %160 = arith.addf %158, %159 : vector<8x128xf32>
    %161 = arith.negf %160 : vector<8x128xf32>
    %162 = math.exp %161 : vector<8x128xf32>
    %cst_46 = arith.constant 1.000000e+00 : f32
    %163 = vector.broadcast %cst_46 : f32 to vector<8x128xf32>
    %164 = arith.addf %163, %162 : vector<8x128xf32>
    %165 = arith.divf %163, %164 : vector<8x128xf32>
    %166 = vector.extract_strided_slice %165 {offsets = [0, 0], sizes = [8, 32], strides = [1, 1]} : vector<8x128xf32> to vector<8x32xf32>
    %167 = vector.extract_strided_slice %165 {offsets = [0, 32], sizes = [8, 32], strides = [1, 1]} : vector<8x128xf32> to vector<8x32xf32>
    %168 = vector.extract_strided_slice %165 {offsets = [0, 64], sizes = [8, 32], strides = [1, 1]} : vector<8x128xf32> to vector<8x32xf32>
    %cst_47 = arith.constant 2.000000e+00 : f32
    %169 = vector.broadcast %cst_47 : f32 to vector<8x32xf32>
    %170 = arith.mulf %169, %168 : vector<8x32xf32>
    %cst_48 = arith.constant 1.000000e+00 : f32
    %171 = vector.broadcast %cst_48 : f32 to vector<8x32xf32>
    %172 = arith.subf %170, %171 : vector<8x32xf32>
    %173 = vector.extract_strided_slice %165 {offsets = [0, 96], sizes = [8, 32], strides = [1, 1]} : vector<8x128xf32> to vector<8x32xf32>
    %174 = arith.mulf %167, %155 : vector<8x32xf32>
    %175 = arith.mulf %166, %172 : vector<8x32xf32>
    %176 = arith.addf %174, %175 : vector<8x32xf32>
    %177 = math.tanh %176 : vector<8x32xf32>
    %178 = arith.mulf %173, %177 : vector<8x32xf32>
    %179 = vector.extract_strided_slice %29 {offsets = [56, 0], sizes = [8, 128], strides = [1, 1]} : vector<64x128xf32> to vector<8x128xf32>
    %cst_49 = arith.constant dense<0.000000e+00> : vector<8x128xf32>
    %180 = tpu.matmul %178, %4, %cst_49 {dimension_numbers = #tpu.dot_dimension_numbers<[1], [0], [0], [1], [0, 0, 1, 1], [], []>} : vector<8x32xf32>, vector<32x128xf32>, vector<8x128xf32> -> vector<8x128xf32>
    %181 = arith.addf %179, %180 : vector<8x128xf32>
    %182 = arith.negf %181 : vector<8x128xf32>
    %183 = math.exp %182 : vector<8x128xf32>
    %cst_50 = arith.constant 1.000000e+00 : f32
    %184 = vector.broadcast %cst_50 : f32 to vector<8x128xf32>
    %185 = arith.addf %184, %183 : vector<8x128xf32>
    %186 = arith.divf %184, %185 : vector<8x128xf32>
    %187 = vector.extract_strided_slice %186 {offsets = [0, 0], sizes = [8, 32], strides = [1, 1]} : vector<8x128xf32> to vector<8x32xf32>
    %188 = vector.extract_strided_slice %186 {offsets = [0, 32], sizes = [8, 32], strides = [1, 1]} : vector<8x128xf32> to vector<8x32xf32>
    %189 = vector.extract_strided_slice %186 {offsets = [0, 64], sizes = [8, 32], strides = [1, 1]} : vector<8x128xf32> to vector<8x32xf32>
    %cst_51 = arith.constant 2.000000e+00 : f32
    %190 = vector.broadcast %cst_51 : f32 to vector<8x32xf32>
    %191 = arith.mulf %190, %189 : vector<8x32xf32>
    %cst_52 = arith.constant 1.000000e+00 : f32
    %192 = vector.broadcast %cst_52 : f32 to vector<8x32xf32>
    %193 = arith.subf %191, %192 : vector<8x32xf32>
    %194 = vector.extract_strided_slice %186 {offsets = [0, 96], sizes = [8, 32], strides = [1, 1]} : vector<8x128xf32> to vector<8x32xf32>
    %195 = arith.mulf %188, %176 : vector<8x32xf32>
    %196 = arith.mulf %187, %193 : vector<8x32xf32>
    %197 = arith.addf %195, %196 : vector<8x32xf32>
    %198 = math.tanh %197 : vector<8x32xf32>
    %199 = arith.mulf %194, %198 : vector<8x32xf32>
    %cst_53 = arith.constant dense<0.000000e+00> : vector<8x128xf32>
    %200 = tpu.matmul %199, %5, %cst_53 {dimension_numbers = #tpu.dot_dimension_numbers<[1], [0], [0], [1], [0, 0, 1, 1], [], []>} : vector<8x32xf32>, vector<32x128xf32>, vector<8x128xf32> -> vector<8x128xf32>
    %201 = vector.broadcast %10 : vector<1x128xf32> to vector<8x128xf32>
    %202 = arith.addf %200, %201 : vector<8x128xf32>
    %203 = vector.extract_strided_slice %202 {offsets = [0, 0], sizes = [8, 5], strides = [1, 1]} : vector<8x128xf32> to vector<8x5xf32>
    %204 = vector.extract_strided_slice %202 {offsets = [0, 5], sizes = [8, 1], strides = [1, 1]} : vector<8x128xf32> to vector<8x1xf32>
    %cst_54 = arith.constant dense<0.000000e+00> : vector<8xf32>
    %205 = vector.multi_reduction <add>, %203, %cst_54 [1] : vector<8x5xf32> to vector<8xf32>
    %206 = vector.shape_cast %205 : vector<8xf32> to vector<8x1xf32>
    %cst_55 = arith.constant 5.000000e+00 : f32
    %207 = vector.broadcast %cst_55 : f32 to vector<8x1xf32>
    %208 = arith.divf %206, %207 : vector<8x1xf32>
    %209 = vector.broadcast %208 : vector<8x1xf32> to vector<8x5xf32>
    %210 = arith.subf %203, %209 : vector<8x5xf32>
    %211 = vector.broadcast %204 : vector<8x1xf32> to vector<8x5xf32>
    %212 = arith.addf %211, %210 : vector<8x5xf32>
    %cst_56 = arith.constant 0.000000e+00 : f32
    %213 = vector.broadcast %cst_56 : f32 to vector<8x128xf32>
    %c0_57 = arith.constant 0 : index
    %c0_58 = arith.constant 0 : index
    %214 = vector.load %arg2[%c0_57, %c0_58] : memref<8x128xf32, #tpu.memory_space<vmem>>, vector<8x128xf32>
    tpu.vector_store %arg2[%c0_57, %c0_58], %213 {strides = array<i32>} : memref<8x128xf32, #tpu.memory_space<vmem>>, vector<8x128xf32>,
    %c0_59 = arith.constant 0 : index
    %c0_60 = arith.constant 0 : index
    %215 = vector.load %arg2[%c0_59, %c0_60] : memref<8x128xf32, #tpu.memory_space<vmem>>, vector<8x5xf32>
    tpu.vector_store %arg2[%c0_59, %c0_60], %212 {strides = array<i32>} : memref<8x128xf32, #tpu.memory_space<vmem>>, vector<8x5xf32>,
    %c0_61 = arith.constant 0 : index
    %c32_62 = arith.constant 32 : index
    %216 = vector.load %arg2[%c0_61, %c32_62] : memref<8x128xf32, #tpu.memory_space<vmem>>, vector<8x32xf32>
    tpu.vector_store %arg2[%c0_61, %c32_62], %199 {strides = array<i32>} : memref<8x128xf32, #tpu.memory_space<vmem>>, vector<8x32xf32>,
    %c0_63 = arith.constant 0 : index
    %c64_64 = arith.constant 64 : index
    %217 = vector.load %arg2[%c0_63, %c64_64] : memref<8x128xf32, #tpu.memory_space<vmem>>, vector<8x32xf32>
    tpu.vector_store %arg2[%c0_63, %c64_64], %197 {strides = array<i32>} : memref<8x128xf32, #tpu.memory_space<vmem>>, vector<8x32xf32>,
    return
  }
}

</mosaic_0001>

<llo_original>
// kernel: tpu_custom_call.1
$region0: #{tpu_custom_call.1}
  #allocation0 [shape = 'u32[]', space=smem, size = 0x4, offset = 0x4, fixed_abs, tag = 'smem constant byte address 0x4 - core index']
  #allocation1 [shape = 'u32[72,128]{1,0:T(1,128)}', space=vmem, size = 0x9000, scoped, tag = 'internal scratch']
  %s0 = inlined_call_operand.hbm [shape: f32[72,128], index: 0, kind: input, shape index: {}]
  %s1 = inlined_call_operand.hbm [shape: f32[584,128], index: 1, kind: input, shape index: {}]
  %s2 = inlined_call_operand.hbm [shape: f32[8,128], index: 2, kind: output, shape index: {}]
  %s3 = sld [smem:[#allocation0]]
  $region26: #{tpu_custom_call.1} parent=0
    _
  %s5 = ssub.s32 1, %s3
  %s6 = scalar_select 0, %s5, %s3
  $region1: #{tpu_custom_call.1} parent=0
    #allocation2 [shape = 'u8[36864]{0}', space=vmem, size = 0x9000, scoped, tag = 'input window, operand 0, single buffered']
    #allocation3 [shape = 's32[1]{0}', space=sflag, size = 0x4, scoped, tag = 'scoped memory for tpu_custom_call.1']
    #allocation4 [shape = 's32[1]{0}', space=sflag, size = 0x4, scoped, tag = 'scoped memory for tpu_custom_call.1']
    #allocation5 [shape = 'u8[299008]{0}', space=vmem, size = 0x49000, scoped, tag = 'input window, operand 1, single buffered']
    #allocation6 [shape = 's32[1]{0}', space=sflag, size = 0x4, scoped, tag = 'scoped memory for tpu_custom_call.1']
    #allocation7 [shape = 'u8[4096]{0}', space=vmem, size = 0x1000, scoped, tag = 'output window, operand 0, single buffered']
    %7 = vsyncpa [#allocation3], 0
    %8 = vsyncpa [#allocation6], 0
    %9 = vsyncpa [#allocation4], 0
    // Predicated region
    $region2: #{tpu_custom_call.1} parent=1 // pred_check
      _
    $region3: #{tpu_custom_call.1} parent=1 // pred_check_branch
      %11 = sbr.rel (0) target = $region5
    $region4: #{tpu_custom_call.1} parent=1 // pred_region
      %13 = vsyncadd [#allocation3], 0
      %s14 = sshll.u32 %s0, 4
      %s15 = int_to_ptr.hbm [resolvable:$true] %s14
      %s16 = sshll.u32 [#allocation2], 4
      %s17 = int_to_ptr.vmem [resolvable:$true] %s16
      %22 = dma.hbm_to_vmem [thread:$0]  %s15, 1152, %s17, [#allocation3], 128, 128, 8
    $region5: #{tpu_custom_call.1} parent=1 // pred_fallthru
      _
    // Predicated region
    $region6: #{tpu_custom_call.1} parent=1 // pred_check
      _
    $region7: #{tpu_custom_call.1} parent=1 // pred_check_branch
      %24 = sbr.rel (0) target = $region9
    $region8: #{tpu_custom_call.1} parent=1 // pred_region
      %26 = vsyncadd [#allocation6], 0
      %s27 = sshll.u32 %s1, 4
      %s28 = int_to_ptr.hbm [resolvable:$true] %s27
      %s29 = sshll.u32 [#allocation5], 4
      %s30 = int_to_ptr.vmem [resolvable:$true] %s29
      %35 = dma.hbm_to_vmem [thread:$0]  %s28, 9344, %s30, [#allocation6], 128, 128, 8
    $region9: #{tpu_custom_call.1} parent=1 // pred_fallthru
      _
    // Predicated region
    $region10: #{tpu_custom_call.1} parent=1 // pred_check
      _
    $region11: #{tpu_custom_call.1} parent=1 // pred_check_branch
      %37 = sbr.rel (0) target = $region13
    $region12: #{tpu_custom_call.1} parent=1 // pred_region
      %39 = dma.done [#allocation3], 1152
    $region13: #{tpu_custom_call.1} parent=1 // pred_fallthru
      _
    // Predicated region
    $region14: #{tpu_custom_call.1} parent=1 // pred_check
      _
    $region15: #{tpu_custom_call.1} parent=1 // pred_check_branch
      %41 = sbr.rel (0) target = $region17
    $region16: #{tpu_custom_call.1} parent=1 // pred_region
      %43 = dma.done [#allocation6], 9344
    $region17: #{tpu_custom_call.1} parent=1 // pred_fallthru
      _
    %v44 = vld [vmem:[#allocation5] sm:$0xff]
    %v45 = vld [vmem:[#allocation5 + $0x8] sm:$0xff]
    %v46 = vld [vmem:[#allocation5 + $0x10] sm:$0xff]
    %v47 = vld [vmem:[#allocation5 + $0x18] sm:$0xff]
    %v48 = vld [vmem:[#allocation5 + $0x20] sm:$0xff]
    %v49 = vld [vmem:[#allocation5 + $0x28] sm:$0xff]
    %v50 = vld [vmem:[#allocation5 + $0x30] sm:$0xff]
    %v51 = vld [vmem:[#allocation5 + $0x38] sm:$0xff]
    %v52 = vld [vmem:[#allocation5 + $0x40] sm:$0xff]
    %v53 = vld [vmem:[#allocation5 + $0x48] sm:$0xff]
    %v54 = vld [vmem:[#allocation5 + $0x50] sm:$0xff]
    %v55 = vld [vmem:[#allocation5 + $0x58] sm:$0xff]
    %v56 = vld [vmem:[#allocation5 + $0x60] sm:$0xff]
    %v57 = vld [vmem:[#allocation5 + $0x68] sm:$0xff]
    %v58 = vld [vmem:[#allocation5 + $0x70] sm:$0xff]
    %v59 = vld [vmem:[#allocation5 + $0x78] sm:$0xff]
    %v60 = vld [vmem:[#allocation5 + $0x80] sm:$0xff]
    %v61 = vld [vmem:[#allocation5 + $0x88] sm:$0xff]
    %v62 = vld [vmem:[#allocation5 + $0x90] sm:$0xff]
    %v63 = vld [vmem:[#allocation5 + $0x98] sm:$0xff]
    %v64 = vld [vmem:[#allocation5 + $0xa0] sm:$0xff]
    %v65 = vld [vmem:[#allocation5 + $0xa8] sm:$0xff]
    %v66 = vld [vmem:[#allocation5 + $0xb0] sm:$0xff]
    %v67 = vld [vmem:[#allocation5 + $0xb8] sm:$0xff]
    %v68 = vld [vmem:[#allocation5 + $0xc0] sm:$0xff]
    %v69 = vld [vmem:[#allocation5 + $0xc8] sm:$0xff]
    %v70 = vld [vmem:[#allocation5 + $0xd0] sm:$0xff]
    %v71 = vld [vmem:[#allocation5 + $0xd8] sm:$0xff]
    %v72 = vld [vmem:[#allocation5 + $0xe0] sm:$0xff]
    %v73 = vld [vmem:[#allocation5 + $0xe8] sm:$0xff]
    %v74 = vld [vmem:[#allocation5 + $0xf0] sm:$0xff]
    %v75 = vld [vmem:[#allocation5 + $0xf8] sm:$0xff]
    %v76 = vld [vmem:[#allocation5 + $0x100] sm:$0xff]
    %v77 = vld [vmem:[#allocation5 + $0x108] sm:$0xff]
    %v78 = vld [vmem:[#allocation5 + $0x110] sm:$0xff]
    %v79 = vld [vmem:[#allocation5 + $0x118] sm:$0xff]
    %v80 = vld [vmem:[#allocation5 + $0x120] sm:$0xff]
    %v81 = vld [vmem:[#allocation5 + $0x128] sm:$0xff]
    %v82 = vld [vmem:[#allocation5 + $0x130] sm:$0xff]
    %v83 = vld [vmem:[#allocation5 + $0x138] sm:$0xff]
    %v84 = vld [vmem:[#allocation5 + $0x140] sm:$0xff]
    %v85 = vld [vmem:[#allocation5 + $0x148] sm:$0xff]
    %v86 = vld [vmem:[#allocation5 + $0x150] sm:$0xff]
    %v87 = vld [vmem:[#allocation5 + $0x158] sm:$0xff]
    %v88 = vld [vmem:[#allocation5 + $0x160] sm:$0xff]
    %v89 = vld [vmem:[#allocation5 + $0x168] sm:$0xff]
    %v90 = vld [vmem:[#allocation5 + $0x170] sm:$0xff]
    %v91 = vld [vmem:[#allocation5 + $0x178] sm:$0xff]
    %v92 = vld [vmem:[#allocation5 + $0x180] sm:$0xff]
    %v93 = vld [vmem:[#allocation5 + $0x188] sm:$0xff]
    %v94 = vld [vmem:[#allocation5 + $0x190] sm:$0xff]
    %v95 = vld [vmem:[#allocation5 + $0x198] sm:$0xff]
    %v96 = vld [vmem:[#allocation5 + $0x1a0] sm:$0xff]
    %v97 = vld [vmem:[#allocation5 + $0x1a8] sm:$0xff]
    %v98 = vld [vmem:[#allocation5 + $0x1b0] sm:$0xff]
    %v99 = vld [vmem:[#allocation5 + $0x1b8] sm:$0xff]
    %v100 = vld [vmem:[#allocation5 + $0x1c0] sm:$0xff]
    %v101 = vld [vmem:[#allocation5 + $0x1c8] sm:$0xff]
    %v102 = vld [vmem:[#allocation5 + $0x1d0] sm:$0xff]
    %v103 = vld [vmem:[#allocation5 + $0x1d8] sm:$0xff]
    %v104 = vld [vmem:[#allocation5 + $0x1e0] sm:$0xff]
    %v105 = vld [vmem:[#allocation5 + $0x1e8] sm:$0xff]
    %v106 = vld [vmem:[#allocation5 + $0x1f0] sm:$0xff]
    %v107 = vld [vmem:[#allocation5 + $0x1f8] sm:$0xff]
    %v108 = vld [vmem:[#allocation5 + $0x200] sm:$0xff]
    %v109 = vld [vmem:[#allocation5 + $0x208] sm:$0xff]
    %v110 = vld [vmem:[#allocation5 + $0x210] sm:$0xff]
    %v111 = vld [vmem:[#allocation5 + $0x218] sm:$0xff]
    %v112 = vld [vmem:[#allocation5 + $0x220] sm:$0xff]
    %v113 = vld [vmem:[#allocation5 + $0x228] sm:$0xff]
    %v114 = vld [vmem:[#allocation5 + $0x230] sm:$0xff]
    %v115 = vld [vmem:[#allocation5 + $0x238] sm:$0xff]
    %v116 = vld [vmem:[#allocation5 + $0x240] sm:$0x1]
    %v117 = vld [vmem:[#allocation5 + $0x241] sm:$0x1]
    %v118 = vld [vmem:[#allocation5 + $0x242] sm:$0x1]
    %v119 = vld [vmem:[#allocation5 + $0x243] sm:$0x1]
    %v120 = vld [vmem:[#allocation5 + $0x244] sm:$0x1]
    %v121 = vld [vmem:[#allocation2] sm:$0xff]
    %v122 = vld [vmem:[#allocation2 + $0x8] sm:$0xff]
    %v123 = vld [vmem:[#allocation2 + $0x10] sm:$0xff]
    %v124 = vld [vmem:[#allocation2 + $0x18] sm:$0xff]
    %v125 = vld [vmem:[#allocation2 + $0x20] sm:$0xff]
    %v126 = vld [vmem:[#allocation2 + $0x28] sm:$0xff]
    %v127 = vld [vmem:[#allocation2 + $0x30] sm:$0xff]
    %v128 = vld [vmem:[#allocation2 + $0x38] sm:$0xff]
    %v129 = vperm.slane %v116, 0
    %130 = vmatpush.msra.mxu0 %v59
    %131 = vmatpush.msra.mxu0 %v58
    %132 = vmatpush.msra.mxu0 %v57
    %133 = vmatpush.msra.mxu0 %v56
    %134 = vmatpush.msra.mxu0 %v55
    %135 = vmatpush.msra.mxu0 %v54
    %136 = vmatpush.msra.mxu0 %v53
    %137 = vmatpush.msra.mxu0 %v52
    %138 = vmatpush.msra.mxu0 %v51
    %139 = vmatpush.msra.mxu0 %v50
    %140 = vmatpush.msra.mxu0 %v49
    %141 = vmatpush.msra.mxu0 %v48
    %142 = vmatpush.msra.mxu0 %v47
    %143 = vmatpush.msra.mxu0 %v46
    %144 = vmatpush.msra.mxu0 %v45
    %145 = vmatpush.msra.mxu0 %v44
    %146 = vmatmul.f32.gmra.mxu0 %v121
    %v147 = vpop.f32.mrf.mxu0
    %v148 = vadd.f32 %v129, %v147
    %149 = vmatmul.f32.gmra.mxu0 %v122
    %v150 = vpop.f32.mrf.mxu0
    %v151 = vadd.f32 %v129, %v150
    %152 = vmatmul.f32.gmra.mxu0 %v123
    %v153 = vpop.f32.mrf.mxu0
    %v154 = vadd.f32 %v129, %v153
    %155 = vmatmul.f32.gmra.mxu0 %v124
    %v156 = vpop.f32.mrf.mxu0
    %v157 = vadd.f32 %v129, %v156
    %158 = vmatmul.f32.gmra.mxu0 %v125
    %v159 = vpop.f32.mrf.mxu0
    %v160 = vadd.f32 %v129, %v159
    %161 = vmatmul.f32.gmra.mxu0 %v126
    %v162 = vpop.f32.mrf.mxu0
    %v163 = vadd.f32 %v129, %v162
    %164 = vmatmul.f32.gmra.mxu0 %v127
    %v165 = vpop.f32.mrf.mxu0
    %v166 = vadd.f32 %v129, %v165
    %167 = vmatmul.f32.gmra.mxu0 %v128
    %v168 = vpop.f32.mrf.mxu0
    %v169 = vadd.f32 %v129, %v168
    %170 = vdwg.mxu0
    %v171 = vmax.f32 %v148, 0.0
    %v172 = vmax.f32 %v151, 0.0
    %v173 = vmax.f32 %v154, 0.0
    %v174 = vmax.f32 %v157, 0.0
    %v175 = vmax.f32 %v160, 0.0
    %v176 = vmax.f32 %v163, 0.0
    %v177 = vmax.f32 %v166, 0.0
    %v178 = vmax.f32 %v169, 0.0
    %v179 = vperm.slane %v117, 0
    %180 = vmatpush.msra.mxu0 %v75
    %181 = vmatpush.msra.mxu0 %v74
    %182 = vmatpush.msra.mxu0 %v73
    %183 = vmatpush.msra.mxu0 %v72
    %184 = vmatpush.msra.mxu0 %v71
    %185 = vmatpush.msra.mxu0 %v70
    %186 = vmatpush.msra.mxu0 %v69
    %187 = vmatpush.msra.mxu0 %v68
    %188 = vmatpush.msra.mxu0 %v67
    %189 = vmatpush.msra.mxu0 %v66
    %190 = vmatpush.msra.mxu0 %v65
    %191 = vmatpush.msra.mxu0 %v64
    %192 = vmatpush.msra.mxu0 %v63
    %193 = vmatpush.msra.mxu0 %v62
    %194 = vmatpush.msra.mxu0 %v61
    %195 = vmatpush.msra.mxu0 %v60
    %196 = vmatmul.f32.gmra.mxu0 %v171
    %v197 = vpop.f32.mrf.mxu0
    %v198 = vadd.f32 %v179, %v197
    %199 = vmatmul.f32.gmra.mxu0 %v172
    %v200 = vpop.f32.mrf.mxu0
    %v201 = vadd.f32 %v179, %v200
    %202 = vmatmul.f32.gmra.mxu0 %v173
    %v203 = vpop.f32.mrf.mxu0
    %v204 = vadd.f32 %v179, %v203
    %205 = vmatmul.f32.gmra.mxu0 %v174
    %v206 = vpop.f32.mrf.mxu0
    %v207 = vadd.f32 %v179, %v206
    %208 = vmatmul.f32.gmra.mxu0 %v175
    %v209 = vpop.f32.mrf.mxu0
    %v210 = vadd.f32 %v179, %v209
    %211 = vmatmul.f32.gmra.mxu0 %v176
    %v212 = vpop.f32.mrf.mxu0
    %v213 = vadd.f32 %v179, %v212
    %214 = vmatmul.f32.gmra.mxu0 %v177
    %v215 = vpop.f32.mrf.mxu0
    %v216 = vadd.f32 %v179, %v215
    %217 = vmatmul.f32.gmra.mxu0 %v178
    %v218 = vpop.f32.mrf.mxu0
    %v219 = vadd.f32 %v179, %v218
    %220 = vdwg.mxu0
    %v221 = vmax.f32 %v198, 0.0
    %v222 = vmax.f32 %v201, 0.0
    %v223 = vmax.f32 %v204, 0.0
    %v224 = vmax.f32 %v207, 0.0
    %v225 = vmax.f32 %v210, 0.0
    %v226 = vmax.f32 %v213, 0.0
    %v227 = vmax.f32 %v216, 0.0
    %v228 = vmax.f32 %v219, 0.0
    %v229 = vperm.slane %v118, 0
    %230 = vmatpush.msra.mxu0 %v91
    %231 = vmatpush.msra.mxu0 %v90
    %232 = vmatpush.msra.mxu0 %v89
    %233 = vmatpush.msra.mxu0 %v88
    %234 = vmatpush.msra.mxu0 %v87
    %235 = vmatpush.msra.mxu0 %v86
    %236 = vmatpush.msra.mxu0 %v85
    %237 = vmatpush.msra.mxu0 %v84
    %238 = vmatpush.msra.mxu0 %v83
    %239 = vmatpush.msra.mxu0 %v82
    %240 = vmatpush.msra.mxu0 %v81
    %241 = vmatpush.msra.mxu0 %v80
    %242 = vmatpush.msra.mxu0 %v79
    %243 = vmatpush.msra.mxu0 %v78
    %244 = vmatpush.msra.mxu0 %v77
    %245 = vmatpush.msra.mxu0 %v76
    %246 = vmatmul.f32.gmra.mxu0 %v221
    %v247 = vpop.f32.mrf.mxu0
    %v248 = vadd.f32 %v229, %v247
    %249 = vmatmul.f32.gmra.mxu0 %v222
    %v250 = vpop.f32.mrf.mxu0
    %v251 = vadd.f32 %v229, %v250
    %252 = vmatmul.f32.gmra.mxu0 %v223
    %v253 = vpop.f32.mrf.mxu0
    %v254 = vadd.f32 %v229, %v253
    %255 = vmatmul.f32.gmra.mxu0 %v224
    %v256 = vpop.f32.mrf.mxu0
    %v257 = vadd.f32 %v229, %v256
    %258 = vmatmul.f32.gmra.mxu0 %v225
    %v259 = vpop.f32.mrf.mxu0
    %v260 = vadd.f32 %v229, %v259
    %261 = vmatmul.f32.gmra.mxu0 %v226
    %v262 = vpop.f32.mrf.mxu0
    %v263 = vadd.f32 %v229, %v262
    %264 = vmatmul.f32.gmra.mxu0 %v227
    %v265 = vpop.f32.mrf.mxu0
    %v266 = vadd.f32 %v229, %v265
    %267 = vmatmul.f32.gmra.mxu0 %v228
    %v268 = vpop.f32.mrf.mxu0
    %v269 = vadd.f32 %v229, %v268
    %270 = vdwg.mxu0
    %v271 = vmax.f32 %v248, 0.0
    %v272 = vmax.f32 %v251, 0.0
    %v273 = vmax.f32 %v254, 0.0
    %v274 = vmax.f32 %v257, 0.0
    %v275 = vmax.f32 %v260, 0.0
    %v276 = vmax.f32 %v263, 0.0
    %v277 = vmax.f32 %v266, 0.0
    %v278 = vmax.f32 %v269, 0.0
    %v279 = vperm.slane %v119, 0
    %280 = vmatpush.msra.mxu0 %v107
    %281 = vmatpush.msra.mxu0 %v106
    %282 = vmatpush.msra.mxu0 %v105
    %283 = vmatpush.msra.mxu0 %v104
    %284 = vmatpush.msra.mxu0 %v103
    %285 = vmatpush.msra.mxu0 %v102
    %286 = vmatpush.msra.mxu0 %v101
    %287 = vmatpush.msra.mxu0 %v100
    %288 = vmatpush.msra.mxu0 %v99
    %289 = vmatpush.msra.mxu0 %v98
    %290 = vmatpush.msra.mxu0 %v97
    %291 = vmatpush.msra.mxu0 %v96
    %292 = vmatpush.msra.mxu0 %v95
    %293 = vmatpush.msra.mxu0 %v94
    %294 = vmatpush.msra.mxu0 %v93
    %295 = vmatpush.msra.mxu0 %v92
    %296 = vmatmul.f32.gmra.mxu0 %v271
    %v297 = vpop.f32.mrf.mxu0
    %v298 = vadd.f32 %v279, %v297
    %299 = vmatmul.f32.gmra.mxu0 %v272
    %v300 = vpop.f32.mrf.mxu0
    %v301 = vadd.f32 %v279, %v300
    %302 = vmatmul.f32.gmra.mxu0 %v273
    %v303 = vpop.f32.mrf.mxu0
    %v304 = vadd.f32 %v279, %v303
    %305 = vmatmul.f32.gmra.mxu0 %v274
    %v306 = vpop.f32.mrf.mxu0
    %v307 = vadd.f32 %v279, %v306
    %308 = vmatmul.f32.gmra.mxu0 %v275
    %v309 = vpop.f32.mrf.mxu0
    %v310 = vadd.f32 %v279, %v309
    %311 = vmatmul.f32.gmra.mxu0 %v276
    %v312 = vpop.f32.mrf.mxu0
    %v313 = vadd.f32 %v279, %v312
    %314 = vmatmul.f32.gmra.mxu0 %v277
    %v315 = vpop.f32.mrf.mxu0
    %v316 = vadd.f32 %v279, %v315
    %317 = vmatmul.f32.gmra.mxu0 %v278
    %v318 = vpop.f32.mrf.mxu0
    %v319 = vadd.f32 %v279, %v318
    %320 = vdwg.mxu0
    %v321 = vld [vmem:[#allocation2 + $0x40] sm:$0xff]
    %vm322 = vcmask 261120
    %v324 = vsel %vm322, %v321, 0
    %326 = vmatpush.msra.mxu0 0.0
    %327 = vmatpush.msra.mxu0 0.0
    %328 = vmatpush.msra.mxu0 0.0
    %329 = vmatpush.msra.mxu0 0.0
    %330 = vmatpush.msra.mxu0 0.0
    %331 = vmatpush.msra.mxu0 0.0
    %332 = vmatpush.msra.mxu0 0.0
    %333 = vmatpush.msra.mxu0 0.0
    %334 = vmatpush.msra.mxu0 0.0
    %335 = vmatpush.msra.mxu0 0.0
    %336 = vmatpush.msra.mxu0 0.0
    %337 = vmatpush.msra.mxu0 0.0
    %338 = vmatpush.msra.mxu0 %v111
    %339 = vmatpush.msra.mxu0 %v110
    %340 = vmatpush.msra.mxu0 %v109
    %341 = vmatpush.msra.mxu0 %v108
    %342 = vmatmul.f32.gmra.mxu0 %v324
    %v343 = vpop.f32.mrf.mxu0
    %v344 = vadd.f32 0.0, %v343
    %345 = vdwg.mxu0
    %v346 = vadd.f32 %v298, %v344
    %v347 = vxor.u32 %v346, 2147483648
    %v348 = vmul.f32 %v347, 1.442695
    %v349 = vpow.pop %v348
    %v350 = vadd.f32 %v349, 1.0
    %v351 = vrcp.pop %v350
    %v352 = vmul.f32 %v350, %v351
    %v353 = vsub.f32 1.0, %v352
    %v354 = vmul.f32 %v351, %v353
    %v355 = vadd.f32 %v351, %v354
    %vm356 = vweird.f32 %v350
    %vm357 = vweird.f32 %v351
    %vm358 = vmor %vm356, %vm357
    %v359 = vsel %vm358, %v351, %v355
    %v360 = vand.u32 2147483647, %v350
    %vm361 = vcmp.eq.f32.partialorder %v360, 8.507059e+37
    %v362 = vand.u32 %v350, 2147483648
    %v363 = vor.u32 1.1754944e-38, %v362
    %v364 = vsel %vm361, %v363, %v359
    %v365 = vmul.f32 1.0, %v364
    %v366 = vmul.f32 %v365, 2.0
    %v367 = vsub.f32 %v366, 1.0
    %v368 = vmul.f32 %v365, %v321
    %370 = vrot.lane.b32.xlu0 %v367, 64
    %v371 = vpop.permute.xlu0 %370
    %v373 = vmul.f32 %v365, %v371
    %375 = vrot.lane.b32.xlu0 %v373, 32
    %v376 = vpop.permute.xlu0 %375
    %v378 = vadd.f32 %v368, %v376
    %v379 = vtanh.pop %v378
    %381 = vrot.lane.b32.xlu0 %v379, 64
    %v382 = vpop.permute.xlu0 %381
    %v384 = vmul.f32 %v365, %v382
    %386 = vrot.lane.b32.xlu0 %v384, 32
    %v387 = vpop.permute.xlu0 %386
    %v388 = vsel %vm322, %v387, 0
    %390 = vmatpush.msra.mxu0 0.0
    %391 = vmatpush.msra.mxu0 0.0
    %392 = vmatpush.msra.mxu0 0.0
    %393 = vmatpush.msra.mxu0 0.0
    %394 = vmatpush.msra.mxu0 0.0
    %395 = vmatpush.msra.mxu0 0.0
    %396 = vmatpush.msra.mxu0 0.0
    %397 = vmatpush.msra.mxu0 0.0
    %398 = vmatpush.msra.mxu0 0.0
    %399 = vmatpush.msra.mxu0 0.0
    %400 = vmatpush.msra.mxu0 0.0
    %401 = vmatpush.msra.mxu0 0.0
    %402 = vmatpush.msra.mxu0 %v111
    %403 = vmatpush.msra.mxu0 %v110
    %404 = vmatpush.msra.mxu0 %v109
    %405 = vmatpush.msra.mxu0 %v108
    %406 = vmatmul.f32.gmra.mxu0 %v388
    %v407 = vpop.f32.mrf.mxu0
    %v408 = vadd.f32 0.0, %v407
    %409 = vdwg.mxu0
    %v410 = vadd.f32 %v301, %v408
    %v411 = vxor.u32 %v410, 2147483648
    %v412 = vmul.f32 %v411, 1.442695
    %v413 = vpow.pop %v412
    %v414 = vadd.f32 %v413, 1.0
    %v415 = vrcp.pop %v414
    %v416 = vmul.f32 %v414, %v415
    %v417 = vsub.f32 1.0, %v416
    %v418 = vmul.f32 %v415, %v417
    %v419 = vadd.f32 %v415, %v418
    %vm420 = vweird.f32 %v414
    %vm421 = vweird.f32 %v415
    %vm422 = vmor %vm420, %vm421
    %v423 = vsel %vm422, %v415, %v419
    %v424 = vand.u32 2147483647, %v414
    %vm425 = vcmp.eq.f32.partialorder %v424, 8.507059e+37
    %v426 = vand.u32 %v414, 2147483648
    %v427 = vor.u32 1.1754944e-38, %v426
    %v428 = vsel %vm425, %v427, %v423
    %v429 = vmul.f32 1.0, %v428
    %v430 = vmul.f32 %v429, 2.0
    %v431 = vsub.f32 %v430, 1.0
    %v432 = vmul.f32 %v429, %v378
    %434 = vrot.lane.b32.xlu0 %v431, 64
    %v435 = vpop.permute.xlu0 %434
    %v437 = vmul.f32 %v429, %v435
    %439 = vrot.lane.b32.xlu0 %v437, 32
    %v440 = vpop.permute.xlu0 %439
    %v442 = vadd.f32 %v432, %v440
    %v443 = vtanh.pop %v442
    %445 = vrot.lane.b32.xlu0 %v443, 64
    %v446 = vpop.permute.xlu0 %445
    %v448 = vmul.f32 %v429, %v446
    %450 = vrot.lane.b32.xlu0 %v448, 32
    %v451 = vpop.permute.xlu0 %450
    %v452 = vsel %vm322, %v451, 0
    %454 = vmatpush.msra.mxu0 0.0
    %455 = vmatpush.msra.mxu0 0.0
    %456 = vmatpush.msra.mxu0 0.0
    %457 = vmatpush.msra.mxu0 0.0
    %458 = vmatpush.msra.mxu0 0.0
    %459 = vmatpush.msra.mxu0 0.0
    %460 = vmatpush.msra.mxu0 0.0
    %461 = vmatpush.msra.mxu0 0.0
    %462 = vmatpush.msra.mxu0 0.0
    %463 = vmatpush.msra.mxu0 0.0
    %464 = vmatpush.msra.mxu0 0.0
    %465 = vmatpush.msra.mxu0 0.0
    %466 = vmatpush.msra.mxu0 %v111
    %467 = vmatpush.msra.mxu0 %v110
    %468 = vmatpush.msra.mxu0 %v109
    %469 = vmatpush.msra.mxu0 %v108
    %470 = vmatmul.f32.gmra.mxu0 %v452
    %v471 = vpop.f32.mrf.mxu0
    %v472 = vadd.f32 0.0, %v471
    %473 = vdwg.mxu0
    %v474 = vadd.f32 %v304, %v472
    %v475 = vxor.u32 %v474, 2147483648
    %v476 = vmul.f32 %v475, 1.442695
    %v477 = vpow.pop %v476
    %v478 = vadd.f32 %v477, 1.0
    %v479 = vrcp.pop %v478
    %v480 = vmul.f32 %v478, %v479
    %v481 = vsub.f32 1.0, %v480
    %v482 = vmul.f32 %v479, %v481
    %v483 = vadd.f32 %v479, %v482
    %vm484 = vweird.f32 %v478
    %vm485 = vweird.f32 %v479
    %vm486 = vmor %vm484, %vm485
    %v487 = vsel %vm486, %v479, %v483
    %v488 = vand.u32 2147483647, %v478
    %vm489 = vcmp.eq.f32.partialorder %v488, 8.507059e+37
    %v490 = vand.u32 %v478, 2147483648
    %v491 = vor.u32 1.1754944e-38, %v490
    %v492 = vsel %vm489, %v491, %v487
    %v493 = vmul.f32 1.0, %v492
    %v494 = vmul.f32 %v493, 2.0
    %v495 = vsub.f32 %v494, 1.0
    %v496 = vmul.f32 %v493, %v442
    %498 = vrot.lane.b32.xlu0 %v495, 64
    %v499 = vpop.permute.xlu0 %498
    %v501 = vmul.f32 %v493, %v499
    %503 = vrot.lane.b32.xlu0 %v501, 32
    %v504 = vpop.permute.xlu0 %503
    %v506 = vadd.f32 %v496, %v504
    %v507 = vtanh.pop %v506
    %509 = vrot.lane.b32.xlu0 %v507, 64
    %v510 = vpop.permute.xlu0 %509
    %v512 = vmul.f32 %v493, %v510
    %514 = vrot.lane.b32.xlu0 %v512, 32
    %v515 = vpop.permute.xlu0 %514
    %v516 = vsel %vm322, %v515, 0
    %518 = vmatpush.msra.mxu0 0.0
    %519 = vmatpush.msra.mxu0 0.0
    %520 = vmatpush.msra.mxu0 0.0
    %521 = vmatpush.msra.mxu0 0.0
    %522 = vmatpush.msra.mxu0 0.0
    %523 = vmatpush.msra.mxu0 0.0
    %524 = vmatpush.msra.mxu0 0.0
    %525 = vmatpush.msra.mxu0 0.0
    %526 = vmatpush.msra.mxu0 0.0
    %527 = vmatpush.msra.mxu0 0.0
    %528 = vmatpush.msra.mxu0 0.0
    %529 = vmatpush.msra.mxu0 0.0
    %530 = vmatpush.msra.mxu0 %v111
    %531 = vmatpush.msra.mxu0 %v110
    %532 = vmatpush.msra.mxu0 %v109
    %533 = vmatpush.msra.mxu0 %v108
    %534 = vmatmul.f32.gmra.mxu0 %v516
    %v535 = vpop.f32.mrf.mxu0
    %v536 = vadd.f32 0.0, %v535
    %537 = vdwg.mxu0
    %v538 = vadd.f32 %v307, %v536
    %v539 = vxor.u32 %v538, 2147483648
    %v540 = vmul.f32 %v539, 1.442695
    %v541 = vpow.pop %v540
    %v542 = vadd.f32 %v541, 1.0
    %v543 = vrcp.pop %v542
    %v544 = vmul.f32 %v542, %v543
    %v545 = vsub.f32 1.0, %v544
    %v546 = vmul.f32 %v543, %v545
    %v547 = vadd.f32 %v543, %v546
    %vm548 = vweird.f32 %v542
    %vm549 = vweird.f32 %v543
    %vm550 = vmor %vm548, %vm549
    %v551 = vsel %vm550, %v543, %v547
    %v552 = vand.u32 2147483647, %v542
    %vm553 = vcmp.eq.f32.partialorder %v552, 8.507059e+37
    %v554 = vand.u32 %v542, 2147483648
    %v555 = vor.u32 1.1754944e-38, %v554
    %v556 = vsel %vm553, %v555, %v551
    %v557 = vmul.f32 1.0, %v556
    %v558 = vmul.f32 %v557, 2.0
    %v559 = vsub.f32 %v558, 1.0
    %v560 = vmul.f32 %v557, %v506
    %562 = vrot.lane.b32.xlu0 %v559, 64
    %v563 = vpop.permute.xlu0 %562
    %v565 = vmul.f32 %v557, %v563
    %567 = vrot.lane.b32.xlu0 %v565, 32
    %v568 = vpop.permute.xlu0 %567
    %v570 = vadd.f32 %v560, %v568
    %v571 = vtanh.pop %v570
    %573 = vrot.lane.b32.xlu0 %v571, 64
    %v574 = vpop.permute.xlu0 %573
    %v576 = vmul.f32 %v557, %v574
    %578 = vrot.lane.b32.xlu0 %v576, 32
    %v579 = vpop.permute.xlu0 %578
    %v580 = vsel %vm322, %v579, 0
    %582 = vmatpush.msra.mxu0 0.0
    %583 = vmatpush.msra.mxu0 0.0
    %584 = vmatpush.msra.mxu0 0.0
    %585 = vmatpush.msra.mxu0 0.0
    %586 = vmatpush.msra.mxu0 0.0
    %587 = vmatpush.msra.mxu0 0.0
    %588 = vmatpush.msra.mxu0 0.0
    %589 = vmatpush.msra.mxu0 0.0
    %590 = vmatpush.msra.mxu0 0.0
    %591 = vmatpush.msra.mxu0 0.0
    %592 = vmatpush.msra.mxu0 0.0
    %593 = vmatpush.msra.mxu0 0.0
    %594 = vmatpush.msra.mxu0 %v111
    %595 = vmatpush.msra.mxu0 %v110
    %596 = vmatpush.msra.mxu0 %v109
    %597 = vmatpush.msra.mxu0 %v108
    %598 = vmatmul.f32.gmra.mxu0 %v580
    %v599 = vpop.f32.mrf.mxu0
    %v600 = vadd.f32 0.0, %v599
    %601 = vdwg.mxu0
    %v602 = vadd.f32 %v310, %v600
    %v603 = vxor.u32 %v602, 2147483648
    %v604 = vmul.f32 %v603, 1.442695
    %v605 = vpow.pop %v604
    %v606 = vadd.f32 %v605, 1.0
    %v607 = vrcp.pop %v606
    %v608 = vmul.f32 %v606, %v607
    %v609 = vsub.f32 1.0, %v608
    %v610 = vmul.f32 %v607, %v609
    %v611 = vadd.f32 %v607, %v610
    %vm612 = vweird.f32 %v606
    %vm613 = vweird.f32 %v607
    %vm614 = vmor %vm612, %vm613
    %v615 = vsel %vm614, %v607, %v611
    %v616 = vand.u32 2147483647, %v606
    %vm617 = vcmp.eq.f32.partialorder %v616, 8.507059e+37
    %v618 = vand.u32 %v606, 2147483648
    %v619 = vor.u32 1.1754944e-38, %v618
    %v620 = vsel %vm617, %v619, %v615
    %v621 = vmul.f32 1.0, %v620
    %v622 = vmul.f32 %v621, 2.0
    %v623 = vsub.f32 %v622, 1.0
    %v624 = vmul.f32 %v621, %v570
    %626 = vrot.lane.b32.xlu0 %v623, 64
    %v627 = vpop.permute.xlu0 %626
    %v629 = vmul.f32 %v621, %v627
    %631 = vrot.lane.b32.xlu0 %v629, 32
    %v632 = vpop.permute.xlu0 %631
    %v634 = vadd.f32 %v624, %v632
    %v635 = vtanh.pop %v634
    %637 = vrot.lane.b32.xlu0 %v635, 64
    %v638 = vpop.permute.xlu0 %637
    %v640 = vmul.f32 %v621, %v638
    %642 = vrot.lane.b32.xlu0 %v640, 32
    %v643 = vpop.permute.xlu0 %642
    %v644 = vsel %vm322, %v643, 0
    %646 = vmatpush.msra.mxu0 0.0
    %647 = vmatpush.msra.mxu0 0.0
    %648 = vmatpush.msra.mxu0 0.0
    %649 = vmatpush.msra.mxu0 0.0
    %650 = vmatpush.msra.mxu0 0.0
    %651 = vmatpush.msra.mxu0 0.0
    %652 = vmatpush.msra.mxu0 0.0
    %653 = vmatpush.msra.mxu0 0.0
    %654 = vmatpush.msra.mxu0 0.0
    %655 = vmatpush.msra.mxu0 0.0
    %656 = vmatpush.msra.mxu0 0.0
    %657 = vmatpush.msra.mxu0 0.0
    %658 = vmatpush.msra.mxu0 %v111
    %659 = vmatpush.msra.mxu0 %v110
    %660 = vmatpush.msra.mxu0 %v109
    %661 = vmatpush.msra.mxu0 %v108
    %662 = vmatmul.f32.gmra.mxu0 %v644
    %v663 = vpop.f32.mrf.mxu0
    %v664 = vadd.f32 0.0, %v663
    %665 = vdwg.mxu0
    %v666 = vadd.f32 %v313, %v664
    %v667 = vxor.u32 %v666, 2147483648
    %v668 = vmul.f32 %v667, 1.442695
    %v669 = vpow.pop %v668
    %v670 = vadd.f32 %v669, 1.0
    %v671 = vrcp.pop %v670
    %v672 = vmul.f32 %v670, %v671
    %v673 = vsub.f32 1.0, %v672
    %v674 = vmul.f32 %v671, %v673
    %v675 = vadd.f32 %v671, %v674
    %vm676 = vweird.f32 %v670
    %vm677 = vweird.f32 %v671
    %vm678 = vmor %vm676, %vm677
    %v679 = vsel %vm678, %v671, %v675
    %v680 = vand.u32 2147483647, %v670
    %vm681 = vcmp.eq.f32.partialorder %v680, 8.507059e+37
    %v682 = vand.u32 %v670, 2147483648
    %v683 = vor.u32 1.1754944e-38, %v682
    %v684 = vsel %vm681, %v683, %v679
    %v685 = vmul.f32 1.0, %v684
    %v686 = vmul.f32 %v685, 2.0
    %v687 = vsub.f32 %v686, 1.0
    %v688 = vmul.f32 %v685, %v634
    %690 = vrot.lane.b32.xlu0 %v687, 64
    %v691 = vpop.permute.xlu0 %690
    %v693 = vmul.f32 %v685, %v691
    %695 = vrot.lane.b32.xlu0 %v693, 32
    %v696 = vpop.permute.xlu0 %695
    %v698 = vadd.f32 %v688, %v696
    %v699 = vtanh.pop %v698
    %701 = vrot.lane.b32.xlu0 %v699, 64
    %v702 = vpop.permute.xlu0 %701
    %v704 = vmul.f32 %v685, %v702
    %706 = vrot.lane.b32.xlu0 %v704, 32
    %v707 = vpop.permute.xlu0 %706
    %v708 = vsel %vm322, %v707, 0
    %710 = vmatpush.msra.mxu0 0.0
    %711 = vmatpush.msra.mxu0 0.0
    %712 = vmatpush.msra.mxu0 0.0
    %713 = vmatpush.msra.mxu0 0.0
    %714 = vmatpush.msra.mxu0 0.0
    %715 = vmatpush.msra.mxu0 0.0
    %716 = vmatpush.msra.mxu0 0.0
    %717 = vmatpush.msra.mxu0 0.0
    %718 = vmatpush.msra.mxu0 0.0
    %719 = vmatpush.msra.mxu0 0.0
    %720 = vmatpush.msra.mxu0 0.0
    %721 = vmatpush.msra.mxu0 0.0
    %722 = vmatpush.msra.mxu0 %v111
    %723 = vmatpush.msra.mxu0 %v110
    %724 = vmatpush.msra.mxu0 %v109
    %725 = vmatpush.msra.mxu0 %v108
    %726 = vmatmul.f32.gmra.mxu0 %v708
    %v727 = vpop.f32.mrf.mxu0
    %v728 = vadd.f32 0.0, %v727
    %729 = vdwg.mxu0
    %v730 = vadd.f32 %v316, %v728
    %v731 = vxor.u32 %v730, 2147483648
    %v732 = vmul.f32 %v731, 1.442695
    %v733 = vpow.pop %v732
    %v734 = vadd.f32 %v733, 1.0
    %v735 = vrcp.pop %v734
    %v736 = vmul.f32 %v734, %v735
    %v737 = vsub.f32 1.0, %v736
    %v738 = vmul.f32 %v735, %v737
    %v739 = vadd.f32 %v735, %v738
    %vm740 = vweird.f32 %v734
    %vm741 = vweird.f32 %v735
    %vm742 = vmor %vm740, %vm741
    %v743 = vsel %vm742, %v735, %v739
    %v744 = vand.u32 2147483647, %v734
    %vm745 = vcmp.eq.f32.partialorder %v744, 8.507059e+37
    %v746 = vand.u32 %v734, 2147483648
    %v747 = vor.u32 1.1754944e-38, %v746
    %v748 = vsel %vm745, %v747, %v743
    %v749 = vmul.f32 1.0, %v748
    %v750 = vmul.f32 %v749, 2.0
    %v751 = vsub.f32 %v750, 1.0
    %v752 = vmul.f32 %v749, %v698
    %754 = vrot.lane.b32.xlu0 %v751, 64
    %v755 = vpop.permute.xlu0 %754
    %v757 = vmul.f32 %v749, %v755
    %759 = vrot.lane.b32.xlu0 %v757, 32
    %v760 = vpop.permute.xlu0 %759
    %v762 = vadd.f32 %v752, %v760
    %v763 = vtanh.pop %v762
    %765 = vrot.lane.b32.xlu0 %v763, 64
    %v766 = vpop.permute.xlu0 %765
    %v768 = vmul.f32 %v749, %v766
    %770 = vrot.lane.b32.xlu0 %v768, 32
    %v771 = vpop.permute.xlu0 %770
    %v772 = vsel %vm322, %v771, 0
    %774 = vmatpush.msra.mxu0 0.0
    %775 = vmatpush.msra.mxu0 0.0
    %776 = vmatpush.msra.mxu0 0.0
    %777 = vmatpush.msra.mxu0 0.0
    %778 = vmatpush.msra.mxu0 0.0
    %779 = vmatpush.msra.mxu0 0.0
    %780 = vmatpush.msra.mxu0 0.0
    %781 = vmatpush.msra.mxu0 0.0
    %782 = vmatpush.msra.mxu0 0.0
    %783 = vmatpush.msra.mxu0 0.0
    %784 = vmatpush.msra.mxu0 0.0
    %785 = vmatpush.msra.mxu0 0.0
    %786 = vmatpush.msra.mxu0 %v111
    %787 = vmatpush.msra.mxu0 %v110
    %788 = vmatpush.msra.mxu0 %v109
    %789 = vmatpush.msra.mxu0 %v108
    %790 = vmatmul.f32.gmra.mxu0 %v772
    %v791 = vpop.f32.mrf.mxu0
    %v792 = vadd.f32 0.0, %v791
    %793 = vdwg.mxu0
    %v794 = vadd.f32 %v319, %v792
    %v795 = vxor.u32 %v794, 2147483648
    %v796 = vmul.f32 %v795, 1.442695
    %v797 = vpow.pop %v796
    %v798 = vadd.f32 %v797, 1.0
    %v799 = vrcp.pop %v798
    %v800 = vmul.f32 %v798, %v799
    %v801 = vsub.f32 1.0, %v800
    %v802 = vmul.f32 %v799, %v801
    %v803 = vadd.f32 %v799, %v802
    %vm804 = vweird.f32 %v798
    %vm805 = vweird.f32 %v799
    %vm806 = vmor %vm804, %vm805
    %v807 = vsel %vm806, %v799, %v803
    %v808 = vand.u32 2147483647, %v798
    %vm809 = vcmp.eq.f32.partialorder %v808, 8.507059e+37
    %v810 = vand.u32 %v798, 2147483648
    %v811 = vor.u32 1.1754944e-38, %v810
    %v812 = vsel %vm809, %v811, %v807
    %v813 = vmul.f32 1.0, %v812
    %v814 = vmul.f32 %v813, 2.0
    %v815 = vsub.f32 %v814, 1.0
    %v816 = vmul.f32 %v813, %v762
    %818 = vrot.lane.b32.xlu0 %v815, 64
    %v819 = vpop.permute.xlu0 %818
    %v821 = vmul.f32 %v813, %v819
    %823 = vrot.lane.b32.xlu0 %v821, 32
    %v824 = vpop.permute.xlu0 %823
    %v826 = vadd.f32 %v816, %v824
    %v827 = vtanh.pop %v826
    %829 = vrot.lane.b32.xlu0 %v827, 64
    %v830 = vpop.permute.xlu0 %829
    %v832 = vmul.f32 %v813, %v830
    %v833 = vperm.slane %v120, 0
    %835 = vrot.lane.b32.xlu0 %v832, 32
    %v836 = vpop.permute.xlu0 %835
    %v837 = vsel %vm322, %v836, 0
    %839 = vmatpush.msra.mxu0 0.0
    %840 = vmatpush.msra.mxu0 0.0
    %841 = vmatpush.msra.mxu0 0.0
    %842 = vmatpush.msra.mxu0 0.0
    %843 = vmatpush.msra.mxu0 0.0
    %844 = vmatpush.msra.mxu0 0.0
    %845 = vmatpush.msra.mxu0 0.0
    %846 = vmatpush.msra.mxu0 0.0
    %847 = vmatpush.msra.mxu0 0.0
    %848 = vmatpush.msra.mxu0 0.0
    %849 = vmatpush.msra.mxu0 0.0
    %850 = vmatpush.msra.mxu0 0.0
    %851 = vmatpush.msra.mxu0 %v115
    %852 = vmatpush.msra.mxu0 %v114
    %853 = vmatpush.msra.mxu0 %v113
    %854 = vmatpush.msra.mxu0 %v112
    %855 = vmatmul.f32.gmra.mxu0 %v837
    %v856 = vpop.f32.mrf.mxu0
    %v857 = vadd.f32 %v833, %v856
    %858 = vdwg.mxu0
    %vm859 = vcmask 39936
    %v860 = vsel %vm859, %v857, 0.0
    %861 = vadd.xlane.f32.xlu0 %v860
    %v862 = vpop.xlane.xlu0 %861
    %v863 = vrcp.pop 5.0
    %v864 = vmul.f32 5.0, %v863
    %v865 = vsub.f32 1.0, %v864
    %v866 = vmul.f32 %v863, %v865
    %v867 = vadd.f32 %v863, %v866
    %vm868 = vweird.f32 %v863
    %v869 = vsel %vm868, %v863, %v867
    %v870 = vmul.f32 %v862, %v869
    %v871 = vsub.f32 %v857, %v870
    %873 = vset.pattern.permute.xlu0 5
    %874 = vperm.xlu0 %873, %v857
    %v875 = vpop.permute.xlu0 %874
    %v877 = vadd.f32 %v875, %v871
    %878 = vst [vmem:[#allocation7] sm:$0xff] 0.0
    %879 = vst.msk [vmem:[#allocation7] sm:$0xff] %vm859, %v877
    %880 = vrot.lane.b32.xlu0 %v832, 64
    %v881 = vpop.permute.xlu0 %880
    %vm883 = vcmask 523520
    %884 = vst.msk [vmem:[#allocation7] sm:$0xff] %vm883, %v881
    %886 = vrot.lane.b32.xlu0 %v826, 32
    %v887 = vpop.permute.xlu0 %886
    %vm889 = vcmask 785920
    %890 = vst.msk [vmem:[#allocation7] sm:$0xff] %vm889, %v887
    // Predicated region
    $region18: #{tpu_custom_call.1} parent=1 // pred_check
      _
    $region19: #{tpu_custom_call.1} parent=1 // pred_check_branch
      %892 = sbr.rel (0) target = $region21
    $region20: #{tpu_custom_call.1} parent=1 // pred_region
      %894 = vsyncadd [#allocation4], 0
      %s896 = sshll.u32 [#allocation7], 4
      %s897 = int_to_ptr.vmem [resolvable:$true] %s896
      %s898 = sshll.u32 %s2, 4
      %s899 = int_to_ptr.hbm [resolvable:$true] %s898
      %901 = dma.vmem_to_hbm [thread:$0]  %s897, 128, %s899, [#allocation4]
    $region21: #{tpu_custom_call.1} parent=1 // pred_fallthru
      _
    // Predicated region
    $region22: #{tpu_custom_call.1} parent=1 // pred_check
      _
    $region23: #{tpu_custom_call.1} parent=1 // pred_check_branch
      %903 = sbr.rel (0) target = $region25
    $region24: #{tpu_custom_call.1} parent=1 // pred_region
      %905 = dma.done [#allocation4], 128
    $region25: #{tpu_custom_call.1} parent=1 // pred_fallthru
      _
    %906 = vsyncpa [#allocation3], 1
    %907 = vsyncpa [#allocation6], 1
    %908 = vsyncpa [#allocation4], 1

</llo_original>
